<compile_context>
chip_gen: v7x
topology: tpu7x:2x2x1
jax: 0.10.0
libtpu: 0.0.40
codegen_flags: <defaults>
</compile_context>

<pallas_src>
import jax
import jax.numpy as jnp
from jax.experimental import pallas as pl
from jax.experimental.pallas import tpu as pltpu


def _full_attention_kernel(q_ref, kv_ref, wq_ref, bq_ref, wkv_ref, bkv_ref,
                           ones_ref, wo_ref, bo_ref, o_ref):
    rows, e = q_ref.shape            # rows = batch_tile * num_query
    b = kv_ref.shape[0]              # batch tile
    p = kv_ref.shape[1] // 2         # nkv * E  (score lane width)
    nkv = p // e
    nq = rows // b
    cd = wq_ref.dtype                # compute dtype (bf16 by default)

    q_res = q_ref[...]               # (rows, E) f32, kept for the residual add

    # ---- Q projection: per-head Linear folded into a block-diagonal weight,
    #      tiled nkv x along lanes -> qp leaves the MXU lane-dense (N = nkv*E)
    #      and already replicated per key group. ----
    qp = jnp.dot(q_res.astype(cd), wq_ref[...],
                 preferred_element_type=jnp.float32) + bq_ref[...]       # (rows, P)

    # ---- fused K+V projection at batch granularity (flat 2-D KV rows, one
    #      lane-dense matmul, no in-kernel 3-D relayouts). ----
    kvp = jnp.dot(kv_ref[...].astype(cd), wkv_ref[...],
                  preferred_element_type=jnp.float32) + bkv_ref[...]      # (b, 2P)
    kp = kvp[:, :p]                  # lane kk*E + h*D + d = k_proj[b, kk, h, d]
    vp = kvp[:, p:]                  # lane kk*E + h*D + d = v_proj[b, kk, h, d]

    # ---- scores for every (head, key) in ONE full-width matmul:
    #      prod[r, kk*E+h*D+d] = q_proj[r,h,d] * k_proj[b,kk,h,d]; the
    #      kron(I_{nkv*H}, ones(D,D)) weight sums over d within each group. ----
    prod = (qp.reshape(b, nq, p) * kp[:, None, :]).reshape(rows, p)
    scores = jnp.dot(prod.astype(cd), ones_ref[...],
                     preferred_element_type=jnp.float32)                  # (rows, P)

    # ---- softmax over keys == over the nkv lane groups of width E.
    #      Cross-group max/sum go through the XLU via lane rolls. ----
    m = scores
    for t in range(1, nkv):
        m = jnp.maximum(m, pltpu.roll(scores, shift=t * e, axis=1))
    pexp = jnp.exp(scores - m)                                            # full-width EUP
    den = pexp
    for t in range(1, nkv):
        den = den + pltpu.roll(pexp, shift=t * e, axis=1)
    pn = pexp * pl.reciprocal(den, approx=True)    # softmax weight a(r,h,kk) per lane

    # ---- attention-weighted V; the sum over key groups is folded into the
    #      output-projection weight. ----
    y = (pn.reshape(b, nq, p) * vp[:, None, :]).reshape(rows, p)
    out = jnp.dot(y.astype(cd), wo_ref[...],
                  preferred_element_type=jnp.float32) + bo_ref[...]       # (rows, E)

    # TODO(synk): nn.Dropout(p=0.1) omitted — eval/inference semantics (identity).
    # TODO(synk): E=32 -> masked vst on the store; lane-dense output packing is
    # the next lever on v5e (gate on vst slot utilization).
    o_ref[...] = (out + q_res).astype(o_ref.dtype)


def fold_params(params, *, num_heads, num_kv, compute_dtype=jnp.bfloat16):
    """Fold the per-head Linears into lane-dense matmul weights.

    Hoisted out of the per-call hot path: the folded weights depend only on the
    parameters, so compute them once per parameter set.
    """
    embed_dims = params["Wo"].shape[0]
    head_dims = embed_dims // num_heads
    P = num_kv * embed_dims
    f32 = jnp.float32

    def head_bd(W):   # per-head Linear (D, D) -> block-diagonal (E, E), applied as x @ M
        return jnp.kron(jnp.eye(num_heads, dtype=f32), W.astype(f32).T)

    def head_bias(bvec):
        return jnp.tile(bvec.astype(f32), num_heads)              # (E,)

    wq_tile = jnp.tile(head_bd(params["Wq"]), (1, num_kv)).astype(compute_dtype)  # (E, P)
    bq_tile = jnp.tile(head_bias(params["bq"]), num_kv)[None, :]                  # (1, P) f32

    wk_big = jnp.kron(jnp.eye(num_kv, dtype=f32), head_bd(params["Wk"]))          # (P, P)
    wv_big = jnp.kron(jnp.eye(num_kv, dtype=f32), head_bd(params["Wv"]))          # (P, P)
    wkv = jnp.zeros((2 * P, 2 * P), f32)
    wkv = wkv.at[:P, :P].set(wk_big).at[P:, P:].set(wv_big)
    wkv = wkv.astype(compute_dtype)                                               # (2P, 2P)
    bkv = jnp.concatenate([jnp.tile(head_bias(params["bk"]), num_kv),
                           jnp.tile(head_bias(params["bv"]), num_kv)])[None, :]   # (1, 2P) f32

    # kron(I_{nkv*H}, ones(D,D)): sums the q*k products over d within each
    # (key, head) lane group -> per-head scores replicated across the group.
    ones_big = jnp.kron(jnp.eye(num_kv * num_heads, dtype=f32),
                        jnp.ones((head_dims, head_dims), f32)).astype(compute_dtype)

    # Output projection with the cross-key reduction folded in: kron(ones(nkv,1), Wo^T).
    wo_fold = jnp.tile(params["Wo"].astype(f32).T, (num_kv, 1)).astype(compute_dtype)  # (P, E)
    bo = params["bo"].astype(f32)[None, :]                                             # (1, E)

    return dict(wq=wq_tile, bq=bq_tile, wkv=wkv, bkv=bkv,
                ones=ones_big, wo=wo_fold, bo=bo)


def _pick_batch_tile(bs, num_query, *, max_rows=4096, min_rows_per_split=512):
    """Largest batch tile with <= max_rows folded rows (v7x-safe default).

    Only keep >= 2 grid steps (v7x megacore) when each step still gets enough
    rows to amortize the ~0.35us per-step overhead; otherwise take the whole
    batch in one step (on single-TC v5e/v6e a split is strictly a loss)."""
    divisors = [d for d in range(1, bs + 1) if bs % d == 0]
    fits = [d for d in divisors if d * num_query <= max_rows] or [1]
    multi = [d for d in fits
             if bs // d >= 2 and d * num_query >= min_rows_per_split]
    return max(multi) if multi else max(fits)


def full_attention(query, key, value, params=None, *, num_heads,
                   compute_dtype=jnp.bfloat16, folded=None):
    """query: (bs, Q, E); key/value: (bs, K, E) with K = num_levels*num_points."""
    bs, num_query, embed_dims = query.shape
    num_kv = key.shape[1]
    assert embed_dims % num_heads == 0
    assert value.shape[1] == num_kv

    if folded is None:
        folded = fold_params(params, num_heads=num_heads, num_kv=num_kv,
                             compute_dtype=compute_dtype)

    P = num_kv * embed_dims
    itemsize_cd = jnp.dtype(compute_dtype).itemsize

    # ---- batch tiling ----
    b_tile = _pick_batch_tile(bs, num_query)
    rows_tile = b_tile * num_query
    if b_tile != bs and (rows_tile % 8 != 0 or b_tile % 8 != 0):
        b_tile = bs                        # full-extent blocks are always legal
        rows_tile = bs * num_query
    grid = (bs // b_tile,)
    rows_total = bs * num_query

    # ---- flat, sublane-dense layouts (free, contiguous reshapes in HBM) ----
    q_rows = query.reshape(rows_total, embed_dims)
    kv_flat = jnp.concatenate(
        [key.reshape(bs, P), value.reshape(bs, P)], axis=1)       # (bs, 2P)

    row_spec = pl.BlockSpec((rows_tile, embed_dims), lambda i: (i, 0))
    kv_spec = pl.BlockSpec((b_tile, 2 * P), lambda i: (i, 0))

    def full(shape):
        return pl.BlockSpec(shape, lambda i: (0, 0))

    # Advisory cost estimate so XLA schedules surrounding ops sensibly.
    flops = 2 * (rows_total * embed_dims * P          # Q projection
                 + bs * (2 * P) * (2 * P)             # fused K/V projection
                 + rows_total * P * P                 # fused score matmul
                 + rows_total * P * embed_dims)       # output projection
    weight_bytes = itemsize_cd * (embed_dims * P + 4 * P * P + P * P
                                  + P * embed_dims) + 4 * (P + 2 * P + embed_dims)
    cost = pl.CostEstimate(
        flops=flops,
        transcendentals=rows_total * P,
        bytes_accessed=4 * (2 * rows_total * embed_dims + bs * 2 * P) + weight_bytes)

    # VMEM budget from the actual buffers (v7x has half the VMEM of v5e/v6e):
    # double-buffered q/out/kv blocks + folded weights + ~4 live (rows, P) f32.
    vmem_needed = (2 * 2 * rows_tile * embed_dims * 4
                   + 2 * b_tile * 2 * P * 4
                   + weight_bytes
                   + 4 * rows_tile * P * 4)
    vmem_limit = int(min(48 * 1024 * 1024, max(8 * 1024 * 1024, 2 * vmem_needed)))

    out_rows = pl.pallas_call(
        _full_attention_kernel,
        out_shape=jax.ShapeDtypeStruct((rows_total, embed_dims), query.dtype),
        grid_spec=pltpu.PrefetchScalarGridSpec(
            num_scalar_prefetch=0,
            grid=grid,
            in_specs=[row_spec, kv_spec,
                      full((embed_dims, P)), full((1, P)),         # Wq tiled, bq
                      full((2 * P, 2 * P)), full((1, 2 * P)),      # fused K/V weight, bias
                      full((P, P)),                                # per-group ones
                      full((P, embed_dims)), full((1, embed_dims))],  # Wo fold, bo
            out_specs=row_spec,
        ),
        compiler_params=pltpu.CompilerParams(
            dimension_semantics=("parallel",),
            vmem_limit_bytes=vmem_limit),
        cost_estimate=cost,
    )(q_rows, kv_flat, folded["wq"], folded["bq"], folded["wkv"], folded["bkv"],
      folded["ones"], folded["wo"], folded["bo"])

    return out_rows.reshape(bs, num_query, embed_dims)


def full_attention_reference(query, key, value, params, *, num_heads):
    """Pure-JAX reference matching the PyTorch forward (dropout in eval)."""
    bs, Q, E = query.shape
    K = key.shape[1]
    D = E // num_heads
    qh = query.reshape(bs, Q, num_heads, D)
    kh = key.reshape(bs, K, num_heads, D)
    vh = value.reshape(bs, K, num_heads, D)
    q = qh @ params["Wq"].T + params["bq"]
    k = kh @ params["Wk"].T + params["bk"]
    v = vh @ params["Wv"].T + params["bv"]
    aw = jnp.einsum("bqhd,bkhd->bqhk", q, k)
    aw = jax.nn.softmax(aw, axis=-1)
    attn = jnp.einsum("bqhk,bkhd->bqhd", aw, v).reshape(bs, Q, E)
    out = attn @ params["Wo"].T + params["bo"]
    return out + query


if __name__ == "__main__":
    # Module-consistent small shapes:
    #   embed_dims=32, num_heads=8 -> head_dims=4
    #   num_levels=1, num_points=4 -> num_key = num_value = 4
    bs, num_query, embed_dims = 2, 8, 32
    num_heads = 8
    head_dims = embed_dims // num_heads
    num_levels, num_points = 1, 4
    num_key = num_levels * num_points

    root = jax.random.PRNGKey(0)
    keys = jax.random.split(root, 12)

    def lin_init(kw, kb, fan_in, out_f, in_f):
        bound = 1.0 / jnp.sqrt(fan_in)
        W = jax.random.uniform(kw, (out_f, in_f), jnp.float32, -bound, bound)
        b = jax.random.uniform(kb, (out_f,), jnp.float32, -bound, bound)
        return W, b

    Wq, bq = lin_init(keys[0], keys[1], head_dims, head_dims, head_dims)
    Wk, bk = lin_init(keys[2], keys[3], head_dims, head_dims, head_dims)
    Wv, bv = lin_init(keys[4], keys[5], head_dims, head_dims, head_dims)
    Wo, bo = lin_init(keys[6], keys[7], embed_dims, embed_dims, embed_dims)
    params = dict(Wq=Wq, bq=bq, Wk=Wk, bk=bk, Wv=Wv, bv=bv, Wo=Wo, bo=bo)

    query = jax.random.normal(keys[8], (bs, num_query, embed_dims), jnp.float32)
    key_t = jax.random.normal(keys[9], (bs, num_key, embed_dims), jnp.float32)
    value = jax.random.normal(keys[10], (bs, num_key, embed_dims), jnp.float32)

    ref = full_attention_reference(query, key_t, value, params, num_heads=num_heads)

    # f32 compute path: tight-ish check — only the approximate EUP reciprocal on
    # the softmax denominator separates it from the pure-JAX reference.
    folded_f32 = fold_params(params, num_heads=num_heads, num_kv=num_key,
                             compute_dtype=jnp.float32)
    out_f32 = full_attention(query, key_t, value, num_heads=num_heads,
                             compute_dtype=jnp.float32, folded=folded_f32)
    out_f32 = jax.block_until_ready(out_f32)
    assert out_f32.shape == (bs, num_query, embed_dims)
    assert jnp.allclose(out_f32, ref, atol=2e-2, rtol=2e-2), (
        float(jnp.max(jnp.abs(out_f32 - ref))))

    # Default fast path: bf16 MXU operands (f32 accumulation) — looser tolerance.
    folded_bf16 = fold_params(params, num_heads=num_heads, num_kv=num_key,
                              compute_dtype=jnp.bfloat16)
    out_bf16 = full_attention(query, key_t, value, num_heads=num_heads,
                              folded=folded_bf16)
    out_bf16 = jax.block_until_ready(out_bf16)
    assert out_bf16.shape == (bs, num_query, embed_dims)
    assert jnp.allclose(out_bf16, ref, atol=1e-1, rtol=5e-2), (
        float(jnp.max(jnp.abs(out_bf16 - ref))))

    print("KERNEL_OK")
</pallas_src>

<mosaic_0001>
module attributes {stable_mosaic.version = 11 : i64} {
  func.func @_full_attention_kernel(%arg0: i32, %arg1: memref<16x32xf32, #tpu.memory_space<vmem>>, %arg2: memref<2x256xf32, #tpu.memory_space<vmem>>, %arg3: memref<32x128xf32, #tpu.memory_space<vmem>>, %arg4: memref<1x128xf32, #tpu.memory_space<vmem>>, %arg5: memref<256x256xf32, #tpu.memory_space<vmem>>, %arg6: memref<1x256xf32, #tpu.memory_space<vmem>>, %arg7: memref<128x128xf32, #tpu.memory_space<vmem>>, %arg8: memref<128x32xf32, #tpu.memory_space<vmem>>, %arg9: memref<1x32xf32, #tpu.memory_space<vmem>>, %arg10: memref<16x32xf32, #tpu.memory_space<vmem>>) attributes {dimension_semantics = [#tpu.dimension_semantics<parallel>], iteration_bounds = array<i64: 1>, scalar_prefetch = 0 : i64, scratch_operands = 0 : i64, tpu.core_type = #tpu.core_type<tc>, window_params = [{transform_indices = @transform_0, window_bounds = array<i64: 16, 32>}, {transform_indices = @transform_1, window_bounds = array<i64: 2, 256>}, {pipeline_mode = #tpu.pipeline_mode<synchronous>, transform_indices = @transform_2, window_bounds = array<i64: 32, 128>}, {pipeline_mode = #tpu.pipeline_mode<synchronous>, transform_indices = @transform_3, window_bounds = array<i64: 1, 128>}, {pipeline_mode = #tpu.pipeline_mode<synchronous>, transform_indices = @transform_4, window_bounds = array<i64: 256, 256>}, {pipeline_mode = #tpu.pipeline_mode<synchronous>, transform_indices = @transform_5, window_bounds = array<i64: 1, 256>}, {pipeline_mode = #tpu.pipeline_mode<synchronous>, transform_indices = @transform_6, window_bounds = array<i64: 128, 128>}, {pipeline_mode = #tpu.pipeline_mode<synchronous>, transform_indices = @transform_7, window_bounds = array<i64: 128, 32>}, {pipeline_mode = #tpu.pipeline_mode<synchronous>, transform_indices = @transform_8, window_bounds = array<i64: 1, 32>}, {transform_indices = @transform_9, window_bounds = array<i64: 16, 32>}]} {
    %c0 = arith.constant 0 : index
    %c0_0 = arith.constant 0 : index
    %0 = vector.load %arg1[%c0, %c0_0] : memref<16x32xf32, #tpu.memory_space<vmem>>, vector<16x32xf32>
    %c0_1 = arith.constant 0 : index
    %c0_2 = arith.constant 0 : index
    %1 = vector.load %arg3[%c0_1, %c0_2] : memref<32x128xf32, #tpu.memory_space<vmem>>, vector<32x128xf32>
    %cst = arith.constant dense<0.000000e+00> : vector<16x128xf32>
    %2 = tpu.matmul %0, %1, %cst {dimension_numbers = #tpu.dot_dimension_numbers<[1], [0], [0], [1], [0, 0, 1, 1], [], []>} : vector<16x32xf32>, vector<32x128xf32>, vector<16x128xf32> -> vector<16x128xf32>
    %c0_3 = arith.constant 0 : index
    %c0_4 = arith.constant 0 : index
    %3 = vector.load %arg4[%c0_3, %c0_4] : memref<1x128xf32, #tpu.memory_space<vmem>>, vector<1x128xf32>
    %4 = vector.broadcast %3 : vector<1x128xf32> to vector<16x128xf32>
    %5 = arith.addf %2, %4 : vector<16x128xf32>
    %c0_5 = arith.constant 0 : index
    %c0_6 = arith.constant 0 : index
    %6 = vector.load %arg2[%c0_5, %c0_6] : memref<2x256xf32, #tpu.memory_space<vmem>>, vector<2x256xf32>
    %c0_7 = arith.constant 0 : index
    %c0_8 = arith.constant 0 : index
    %7 = vector.load %arg5[%c0_7, %c0_8] : memref<256x256xf32, #tpu.memory_space<vmem>>, vector<256x256xf32>
    %cst_9 = arith.constant dense<0.000000e+00> : vector<2x256xf32>
    %8 = tpu.matmul %6, %7, %cst_9 {dimension_numbers = #tpu.dot_dimension_numbers<[1], [0], [0], [1], [0, 0, 1, 1], [], []>} : vector<2x256xf32>, vector<256x256xf32>, vector<2x256xf32> -> vector<2x256xf32>
    %c0_10 = arith.constant 0 : index
    %c0_11 = arith.constant 0 : index
    %9 = vector.load %arg6[%c0_10, %c0_11] : memref<1x256xf32, #tpu.memory_space<vmem>>, vector<1x256xf32>
    %10 = vector.broadcast %9 : vector<1x256xf32> to vector<2x256xf32>
    %11 = arith.addf %8, %10 : vector<2x256xf32>
    %12 = vector.extract_strided_slice %11 {offsets = [0, 0], sizes = [2, 128], strides = [1, 1]} : vector<2x256xf32> to vector<2x128xf32>
    %13 = vector.extract_strided_slice %11 {offsets = [0, 128], sizes = [2, 128], strides = [1, 1]} : vector<2x256xf32> to vector<2x128xf32>
    %14 = vector.shape_cast %5 : vector<16x128xf32> to vector<2x8x128xf32>
    %15 = vector.shape_cast %12 : vector<2x128xf32> to vector<2x1x128xf32>
    %16 = vector.broadcast %15 : vector<2x1x128xf32> to vector<2x8x128xf32>
    %17 = arith.mulf %14, %16 : vector<2x8x128xf32>
    %18 = vector.shape_cast %17 : vector<2x8x128xf32> to vector<16x128xf32>
    %c0_12 = arith.constant 0 : index
    %c0_13 = arith.constant 0 : index
    %19 = vector.load %arg7[%c0_12, %c0_13] : memref<128x128xf32, #tpu.memory_space<vmem>>, vector<128x128xf32>
    %cst_14 = arith.constant dense<0.000000e+00> : vector<16x128xf32>
    %20 = tpu.matmul %18, %19, %cst_14 {dimension_numbers = #tpu.dot_dimension_numbers<[1], [0], [0], [1], [0, 0, 1, 1], [], []>} : vector<16x128xf32>, vector<128x128xf32>, vector<16x128xf32> -> vector<16x128xf32>
    %c32_i32 = arith.constant 32 : i32
    %21 = tpu.dynamic_rotate %20 by %c32_i32 dim 1 : vector<16x128xf32>, i32 -> vector<16x128xf32>
    %22 = arith.maximumf %20, %21 : vector<16x128xf32>
    %c64_i32 = arith.constant 64 : i32
    %23 = tpu.dynamic_rotate %20 by %c64_i32 dim 1 : vector<16x128xf32>, i32 -> vector<16x128xf32>
    %24 = arith.maximumf %22, %23 : vector<16x128xf32>
    %c96_i32 = arith.constant 96 : i32
    %25 = tpu.dynamic_rotate %20 by %c96_i32 dim 1 : vector<16x128xf32>, i32 -> vector<16x128xf32>
    %26 = arith.maximumf %24, %25 : vector<16x128xf32>
    %27 = arith.subf %20, %26 : vector<16x128xf32>
    %28 = math.exp %27 : vector<16x128xf32>
    %c32_i32_15 = arith.constant 32 : i32
    %29 = tpu.dynamic_rotate %28 by %c32_i32_15 dim 1 : vector<16x128xf32>, i32 -> vector<16x128xf32>
    %30 = arith.addf %28, %29 : vector<16x128xf32>
    %c64_i32_16 = arith.constant 64 : i32
    %31 = tpu.dynamic_rotate %28 by %c64_i32_16 dim 1 : vector<16x128xf32>, i32 -> vector<16x128xf32>
    %32 = arith.addf %30, %31 : vector<16x128xf32>
    %c96_i32_17 = arith.constant 96 : i32
    %33 = tpu.dynamic_rotate %28 by %c96_i32_17 dim 1 : vector<16x128xf32>, i32 -> vector<16x128xf32>
    %34 = arith.addf %32, %33 : vector<16x128xf32>
    %35 = tpu.reciprocal %34 {approx = true} : vector<16x128xf32> -> vector<16x128xf32>
    %36 = arith.mulf %28, %35 : vector<16x128xf32>
    %37 = vector.shape_cast %36 : vector<16x128xf32> to vector<2x8x128xf32>
    %38 = vector.shape_cast %13 : vector<2x128xf32> to vector<2x1x128xf32>
    %39 = vector.broadcast %38 : vector<2x1x128xf32> to vector<2x8x128xf32>
    %40 = arith.mulf %37, %39 : vector<2x8x128xf32>
    %41 = vector.shape_cast %40 : vector<2x8x128xf32> to vector<16x128xf32>
    %c0_18 = arith.constant 0 : index
    %c0_19 = arith.constant 0 : index
    %42 = vector.load %arg8[%c0_18, %c0_19] : memref<128x32xf32, #tpu.memory_space<vmem>>, vector<128x32xf32>
    %cst_20 = arith.constant dense<0.000000e+00> : vector<16x32xf32>
    %43 = tpu.matmul %41, %42, %cst_20 {dimension_numbers = #tpu.dot_dimension_numbers<[1], [0], [0], [1], [0, 0, 1, 1], [], []>} : vector<16x128xf32>, vector<128x32xf32>, vector<16x32xf32> -> vector<16x32xf32>
    %c0_21 = arith.constant 0 : index
    %c0_22 = arith.constant 0 : index
    %44 = vector.load %arg9[%c0_21, %c0_22] : memref<1x32xf32, #tpu.memory_space<vmem>>, vector<1x32xf32>
    %45 = vector.broadcast %44 : vector<1x32xf32> to vector<16x32xf32>
    %46 = arith.addf %43, %45 : vector<16x32xf32>
    %47 = arith.addf %46, %0 : vector<16x32xf32>
    %c0_23 = arith.constant 0 : index
    %c0_24 = arith.constant 0 : index
    %48 = vector.load %arg10[%c0_23, %c0_24] : memref<16x32xf32, #tpu.memory_space<vmem>>, vector<16x32xf32>
    tpu.vector_store %arg10[%c0_23, %c0_24], %47 {strides = array<i32>} : memref<16x32xf32, #tpu.memory_space<vmem>>, vector<16x32xf32>,
    return
  }
  func.func @transform_0(%arg0: i32) -> (i32, i32) {
    %c0_i32 = arith.constant 0 : i32
    %c0_i32_0 = arith.constant 0 : i32
    return %arg0, %c0_i32 : i32, i32
  }
  func.func @transform_1(%arg0: i32) -> (i32, i32) {
    %c0_i32 = arith.constant 0 : i32
    %c0_i32_0 = arith.constant 0 : i32
    return %arg0, %c0_i32 : i32, i32
  }
  func.func @transform_2(%arg0: i32) -> (i32, i32) {
    %c0_i32 = arith.constant 0 : i32
    %c0_i32_0 = arith.constant 0 : i32
    %c0_i32_1 = arith.constant 0 : i32
    return %c0_i32, %c0_i32_0 : i32, i32
  }
  func.func @transform_3(%arg0: i32) -> (i32, i32) {
    %c0_i32 = arith.constant 0 : i32
    %c0_i32_0 = arith.constant 0 : i32
    %c0_i32_1 = arith.constant 0 : i32
    return %c0_i32, %c0_i32_0 : i32, i32
  }
  func.func @transform_4(%arg0: i32) -> (i32, i32) {
    %c0_i32 = arith.constant 0 : i32
    %c0_i32_0 = arith.constant 0 : i32
    %c0_i32_1 = arith.constant 0 : i32
    return %c0_i32, %c0_i32_0 : i32, i32
  }
  func.func @transform_5(%arg0: i32) -> (i32, i32) {
    %c0_i32 = arith.constant 0 : i32
    %c0_i32_0 = arith.constant 0 : i32
    %c0_i32_1 = arith.constant 0 : i32
    return %c0_i32, %c0_i32_0 : i32, i32
  }
  func.func @transform_6(%arg0: i32) -> (i32, i32) {
    %c0_i32 = arith.constant 0 : i32
    %c0_i32_0 = arith.constant 0 : i32
    %c0_i32_1 = arith.constant 0 : i32
    return %c0_i32, %c0_i32_0 : i32, i32
  }
  func.func @transform_7(%arg0: i32) -> (i32, i32) {
    %c0_i32 = arith.constant 0 : i32
    %c0_i32_0 = arith.constant 0 : i32
    %c0_i32_1 = arith.constant 0 : i32
    return %c0_i32, %c0_i32_0 : i32, i32
  }
  func.func @transform_8(%arg0: i32) -> (i32, i32) {
    %c0_i32 = arith.constant 0 : i32
    %c0_i32_0 = arith.constant 0 : i32
    %c0_i32_1 = arith.constant 0 : i32
    return %c0_i32, %c0_i32_0 : i32, i32
  }
  func.func @transform_9(%arg0: i32) -> (i32, i32) {
    %c0_i32 = arith.constant 0 : i32
    %c0_i32_0 = arith.constant 0 : i32
    return %arg0, %c0_i32 : i32, i32
  }
}

</mosaic_0001>

<llo_original>
// kernel: tpu_custom_call.1
$region0: #{tpu_custom_call.1}
  #allocation0 [shape = 'u32[]', space=smem, size = 0x4, offset = 0x4, fixed_abs, tag = 'smem constant byte address 0x4 - core index']
  #allocation1 [shape = 'u32[144,128]{1,0:T(1,128)}', space=vmem, size = 0x12000, scoped, tag = 'internal scratch']
  %s0 = inlined_call_operand.vmem [shape: f32[16,32], index: 0, kind: input, shape index: {}]
  %s1 = inlined_call_operand.vmem [shape: f32[2,256], index: 1, kind: input, shape index: {}]
  %s2 = inlined_call_operand.vmem [shape: f32[32,128], index: 2, kind: input, shape index: {}]
  %s3 = inlined_call_operand.hbm [shape: f32[1,128], index: 3, kind: input, shape index: {}]
  %s4 = inlined_call_operand.hbm [shape: f32[256,256], index: 4, kind: input, shape index: {}]
  %s5 = inlined_call_operand.vmem [shape: f32[1,256], index: 5, kind: input, shape index: {}]
  %s6 = inlined_call_operand.vmem [shape: f32[128,128], index: 6, kind: input, shape index: {}]
  %s7 = inlined_call_operand.vmem [shape: f32[128,32], index: 7, kind: input, shape index: {}]
  %s8 = inlined_call_operand.vmem [shape: f32[1,32], index: 8, kind: input, shape index: {}]
  %s9 = inlined_call_operand.hbm [shape: f32[16,32], index: 9, kind: output, shape index: {}]
  %s10 = sld [smem:[#allocation0]]
  $region54: #{tpu_custom_call.1} parent=0
    _
  %s12 = ssub.s32 1, %s10
  %s13 = scalar_select 0, %s12, %s10
  $region1: #{tpu_custom_call.1} parent=0
    #allocation2 [shape = 'u8[512]{0}', space=vmem, size = 0x400, scoped, tag = 'input window, operand 3, single buffered']
    #allocation3 [shape = 's32[1]{0}', space=sflag, size = 0x4, scoped, tag = 'scoped memory for tpu_custom_call.1']
    #allocation4 [shape = 's32[1]{0}', space=sflag, size = 0x4, scoped, tag = 'scoped memory for tpu_custom_call.1']
    #allocation5 [shape = 'u8[262144]{0}', space=vmem, size = 0x40000, scoped, tag = 'input window, operand 4, single buffered']
    #allocation6 [shape = 's32[1]{0}', space=sflag, size = 0x4, scoped, tag = 'scoped memory for tpu_custom_call.1']
    #allocation7 [shape = 'u8[8192]{0}', space=vmem, size = 0x2000, scoped, tag = 'output window, operand 0, single buffered']
    %14 = vsyncpa [#allocation3], 0
    %15 = vsyncpa [#allocation6], 0
    %16 = vsyncpa [#allocation4], 0
    // Predicated region
    $region2: #{tpu_custom_call.1} parent=1 // pred_check
      _
    $region3: #{tpu_custom_call.1} parent=1 // pred_check_branch
      %18 = sbr.rel (0) target = $region5
    $region4: #{tpu_custom_call.1} parent=1 // pred_region
      _
    $region5: #{tpu_custom_call.1} parent=1 // pred_fallthru
      _
    // Predicated region
    $region6: #{tpu_custom_call.1} parent=1 // pred_check
      _
    $region7: #{tpu_custom_call.1} parent=1 // pred_check_branch
      %20 = sbr.rel (0) target = $region9
    $region8: #{tpu_custom_call.1} parent=1 // pred_region
      _
    $region9: #{tpu_custom_call.1} parent=1 // pred_fallthru
      _
    // Predicated region
    $region10: #{tpu_custom_call.1} parent=1 // pred_check
      _
    $region11: #{tpu_custom_call.1} parent=1 // pred_check_branch
      %22 = sbr.rel (0) target = $region13
    $region12: #{tpu_custom_call.1} parent=1 // pred_region
      _
    $region13: #{tpu_custom_call.1} parent=1 // pred_fallthru
      _
    // Predicated region
    $region14: #{tpu_custom_call.1} parent=1 // pred_check
      _
    $region15: #{tpu_custom_call.1} parent=1 // pred_check_branch
      %24 = sbr.rel (0) target = $region17
    $region16: #{tpu_custom_call.1} parent=1 // pred_region
      %s26 = ssub.s32 16, 16
      %27 = vsyncadd [#allocation3], %s26
      %s29 = sshll.u32 [#allocation2], 4
      %s30 = int_to_ptr.vmem [resolvable:$true] %s29
      %32 = dma.hbm_to_vmem [thread:$0]  %s3, 16, %s30, [#allocation3]
    $region17: #{tpu_custom_call.1} parent=1 // pred_fallthru
      _
    // Predicated region
    $region18: #{tpu_custom_call.1} parent=1 // pred_check
      _
    $region19: #{tpu_custom_call.1} parent=1 // pred_check_branch
      %34 = sbr.rel (0) target = $region21
    $region20: #{tpu_custom_call.1} parent=1 // pred_region
      %s36 = ssub.s32 8192, 8192
      %37 = vsyncadd [#allocation6], %s36
      %s38 = sshll.u32 [#allocation5], 4
      %s39 = int_to_ptr.vmem [resolvable:$true] %s38
      %44 = dma.hbm_to_vmem [thread:$0]  %s4, 8192, %s39, [#allocation6], 256, 256, 16
    $region21: #{tpu_custom_call.1} parent=1 // pred_fallthru
      _
    // Predicated region
    $region22: #{tpu_custom_call.1} parent=1 // pred_check
      _
    $region23: #{tpu_custom_call.1} parent=1 // pred_check_branch
      %46 = sbr.rel (0) target = $region25
    $region24: #{tpu_custom_call.1} parent=1 // pred_region
      _
    $region25: #{tpu_custom_call.1} parent=1 // pred_fallthru
      _
    // Predicated region
    $region26: #{tpu_custom_call.1} parent=1 // pred_check
      _
    $region27: #{tpu_custom_call.1} parent=1 // pred_check_branch
      %48 = sbr.rel (0) target = $region29
    $region28: #{tpu_custom_call.1} parent=1 // pred_region
      _
    $region29: #{tpu_custom_call.1} parent=1 // pred_fallthru
      _
    // Predicated region
    $region30: #{tpu_custom_call.1} parent=1 // pred_check
      _
    $region31: #{tpu_custom_call.1} parent=1 // pred_check_branch
      %50 = sbr.rel (0) target = $region33
    $region32: #{tpu_custom_call.1} parent=1 // pred_region
      _
    $region33: #{tpu_custom_call.1} parent=1 // pred_fallthru
      _
    // Predicated region
    $region34: #{tpu_custom_call.1} parent=1 // pred_check
      _
    $region35: #{tpu_custom_call.1} parent=1 // pred_check_branch
      %52 = sbr.rel (0) target = $region37
    $region36: #{tpu_custom_call.1} parent=1 // pred_region
      _
    $region37: #{tpu_custom_call.1} parent=1 // pred_fallthru
      _
    // Predicated region
    $region38: #{tpu_custom_call.1} parent=1 // pred_check
      _
    $region39: #{tpu_custom_call.1} parent=1 // pred_check_branch
      %54 = sbr.rel (0) target = $region41
    $region40: #{tpu_custom_call.1} parent=1 // pred_region
      %55 = dma.done [#allocation3], 16
    $region41: #{tpu_custom_call.1} parent=1 // pred_fallthru
      _
    // Predicated region
    $region42: #{tpu_custom_call.1} parent=1 // pred_check
      _
    $region43: #{tpu_custom_call.1} parent=1 // pred_check_branch
      %57 = sbr.rel (0) target = $region45
    $region44: #{tpu_custom_call.1} parent=1 // pred_region
      %58 = dma.done [#allocation6], 8192
    $region45: #{tpu_custom_call.1} parent=1 // pred_fallthru
      _
    %v59 = vld [vmem:[%s0] sm:$0xff]
    %v60 = vld [vmem:[%s0 + $0x8] sm:$0xff]
    %v61 = vld [vmem:[%s2] sm:$0xff]
    %v62 = vld [vmem:[%s2 + $0x8] sm:$0xff]
    %v63 = vld [vmem:[%s2 + $0x10] sm:$0xff]
    %v64 = vld [vmem:[%s2 + $0x18] sm:$0xff]
    %v65 = vld [vmem:[#allocation2] sm:$0x1]
    %v67 = vlaneseq
    %v68 = vshrl.u32 %v67, 7
    %v69 = vsub.s32 0, %v68
    %v70 = vrot.slane %v65, %v69
    %vm72 = vcmask 261120
    %v74 = vsel %vm72, %v59, 0
    %v77 = vsel %vm72, %v60, 0
    %79 = vmatprep.subr.mxu0 0.0
    %80 = vmatpush1.msra.mxu0 %v61
    %81 = vmatprep.subr.mxu0 0.0
    %82 = vmatpush1.msra.mxu0 %v62
    %83 = vmatprep.subr.mxu0 0.0
    %84 = vmatpush1.msra.mxu0 %v63
    %85 = vmatprep.subr.mxu0 0.0
    %86 = vmatpush1.msra.mxu0 %v64
    %87 = vmatprep.subr.mxu0 0.0
    %88 = vmatpush1.msra.mxu0 0.0
    %89 = vmatprep.subr.mxu0 0.0
    %90 = vmatpush1.msra.mxu0 0.0
    %91 = vmatprep.subr.mxu0 0.0
    %92 = vmatpush1.msra.mxu0 0.0
    %93 = vmatprep.subr.mxu0 0.0
    %94 = vmatpush1.msra.mxu0 0.0
    %95 = vmatprep.subr.mxu0 0.0
    %96 = vmatpush1.msra.mxu0 0.0
    %97 = vmatprep.subr.mxu0 0.0
    %98 = vmatpush1.msra.mxu0 0.0
    %99 = vmatprep.subr.mxu0 0.0
    %100 = vmatpush1.msra.mxu0 0.0
    %101 = vmatprep.subr.mxu0 0.0
    %102 = vmatpush1.msra.mxu0 0.0
    %103 = vmatprep.subr.mxu0 0.0
    %104 = vmatpush1.msra.mxu0 0.0
    %105 = vmatprep.subr.mxu0 0.0
    %106 = vmatpush1.msra.mxu0 0.0
    %107 = vmatprep.subr.mxu0 0.0
    %108 = vmatpush1.msra.mxu0 0.0
    %109 = vmatprep.subr.mxu0 0.0
    %110 = vmatpush1.msra.mxu0 0.0
    %111 = vmatprep.subr.mxu0 0.0
    %112 = vmatpush1.msra.mxu0 0.0
    %113 = vmatprep.subr.mxu0 0.0
    %114 = vmatpush1.msra.mxu0 0.0
    %115 = vmatprep.subr.mxu0 0.0
    %116 = vmatpush1.msra.mxu0 0.0
    %117 = vmatprep.subr.mxu0 0.0
    %118 = vmatpush1.msra.mxu0 0.0
    %119 = vmatprep.subr.mxu0 0.0
    %120 = vmatpush1.msra.mxu0 0.0
    %121 = vmatprep.subr.mxu0 0.0
    %122 = vmatpush1.msra.mxu0 0.0
    %123 = vmatprep.subr.mxu0 0.0
    %124 = vmatpush1.msra.mxu0 0.0
    %125 = vmatprep.subr.mxu0 0.0
    %126 = vmatpush1.msra.mxu0 0.0
    %127 = vmatprep.subr.mxu0 0.0
    %128 = vmatpush1.msra.mxu0 0.0
    %129 = vmatprep.subr.mxu0 0.0
    %130 = vmatpush1.msra.mxu0 0.0
    %131 = vmatprep.subr.mxu0 0.0
    %132 = vmatpush1.msra.mxu0 0.0
    %133 = vmatprep.subr.mxu0 0.0
    %134 = vmatpush1.msra.mxu0 0.0
    %135 = vmatprep.subr.mxu0 0.0
    %136 = vmatpush1.msra.mxu0 0.0
    %137 = vmatprep.subr.mxu0 0.0
    %138 = vmatpush1.msra.mxu0 0.0
    %139 = vmatprep.subr.mxu0 0.0
    %140 = vmatpush1.msra.mxu0 0.0
    %141 = vmatprep.subr.mxu0 0.0
    %142 = vmatpush1.msra.mxu0 0.0
    %143 = vmatprep.mubr.f32.mxu0 0.0
    %144 = vmatmul.mubr.f32.gmra.mrb[0].mxu0 %v74
    %v145 = vpop.f32.mrb[0].mxu0
    %v146 = vadd.f32 %v70, %v145
    %v147 = vpop.f32.mrb[0].mxu0
    %148 = vmatprep.mubr.f32.mxu0 0.0
    %149 = vmatmul.mubr.f32.gmra.mrb[0].mxu0 %v77
    %v150 = vpop.f32.mrb[0].mxu0
    %v151 = vadd.f32 %v70, %v150
    %v152 = vpop.f32.mrb[0].mxu0
    %153 = vdwg.mxu0
    %v154 = vld [vmem:[%s1] sm:$0xf]
    %v155 = vld [vmem:[#allocation5] sm:$0xff]
    %v156 = vld [vmem:[#allocation5 + $0x8] sm:$0xff]
    %v157 = vld [vmem:[#allocation5 + $0x10] sm:$0xff]
    %v158 = vld [vmem:[#allocation5 + $0x18] sm:$0xff]
    %v159 = vld [vmem:[#allocation5 + $0x20] sm:$0xff]
    %v160 = vld [vmem:[#allocation5 + $0x28] sm:$0xff]
    %v161 = vld [vmem:[#allocation5 + $0x30] sm:$0xff]
    %v162 = vld [vmem:[#allocation5 + $0x38] sm:$0xff]
    %v163 = vld [vmem:[#allocation5 + $0x40] sm:$0xff]
    %v164 = vld [vmem:[#allocation5 + $0x48] sm:$0xff]
    %v165 = vld [vmem:[#allocation5 + $0x50] sm:$0xff]
    %v166 = vld [vmem:[#allocation5 + $0x58] sm:$0xff]
    %v167 = vld [vmem:[#allocation5 + $0x60] sm:$0xff]
    %v168 = vld [vmem:[#allocation5 + $0x68] sm:$0xff]
    %v169 = vld [vmem:[#allocation5 + $0x70] sm:$0xff]
    %v170 = vld [vmem:[#allocation5 + $0x78] sm:$0xff]
    %v171 = vld [vmem:[#allocation5 + $0x80] sm:$0xff]
    %v172 = vld [vmem:[#allocation5 + $0x88] sm:$0xff]
    %v173 = vld [vmem:[#allocation5 + $0x90] sm:$0xff]
    %v174 = vld [vmem:[#allocation5 + $0x98] sm:$0xff]
    %v175 = vld [vmem:[#allocation5 + $0xa0] sm:$0xff]
    %v176 = vld [vmem:[#allocation5 + $0xa8] sm:$0xff]
    %v177 = vld [vmem:[#allocation5 + $0xb0] sm:$0xff]
    %v178 = vld [vmem:[#allocation5 + $0xb8] sm:$0xff]
    %v179 = vld [vmem:[#allocation5 + $0xc0] sm:$0xff]
    %v180 = vld [vmem:[#allocation5 + $0xc8] sm:$0xff]
    %v181 = vld [vmem:[#allocation5 + $0xd0] sm:$0xff]
    %v182 = vld [vmem:[#allocation5 + $0xd8] sm:$0xff]
    %v183 = vld [vmem:[#allocation5 + $0xe0] sm:$0xff]
    %v184 = vld [vmem:[#allocation5 + $0xe8] sm:$0xff]
    %v185 = vld [vmem:[#allocation5 + $0xf0] sm:$0xff]
    %v186 = vld [vmem:[#allocation5 + $0xf8] sm:$0xff]
    %v187 = vld [vmem:[#allocation5 + $0x100] sm:$0xff]
    %v188 = vld [vmem:[#allocation5 + $0x108] sm:$0xff]
    %v189 = vld [vmem:[#allocation5 + $0x110] sm:$0xff]
    %v190 = vld [vmem:[#allocation5 + $0x118] sm:$0xff]
    %v191 = vld [vmem:[#allocation5 + $0x120] sm:$0xff]
    %v192 = vld [vmem:[#allocation5 + $0x128] sm:$0xff]
    %v193 = vld [vmem:[#allocation5 + $0x130] sm:$0xff]
    %v194 = vld [vmem:[#allocation5 + $0x138] sm:$0xff]
    %v195 = vld [vmem:[#allocation5 + $0x140] sm:$0xff]
    %v196 = vld [vmem:[#allocation5 + $0x148] sm:$0xff]
    %v197 = vld [vmem:[#allocation5 + $0x150] sm:$0xff]
    %v198 = vld [vmem:[#allocation5 + $0x158] sm:$0xff]
    %v199 = vld [vmem:[#allocation5 + $0x160] sm:$0xff]
    %v200 = vld [vmem:[#allocation5 + $0x168] sm:$0xff]
    %v201 = vld [vmem:[#allocation5 + $0x170] sm:$0xff]
    %v202 = vld [vmem:[#allocation5 + $0x178] sm:$0xff]
    %v203 = vld [vmem:[#allocation5 + $0x180] sm:$0xff]
    %v204 = vld [vmem:[#allocation5 + $0x188] sm:$0xff]
    %v205 = vld [vmem:[#allocation5 + $0x190] sm:$0xff]
    %v206 = vld [vmem:[#allocation5 + $0x198] sm:$0xff]
    %v207 = vld [vmem:[#allocation5 + $0x1a0] sm:$0xff]
    %v208 = vld [vmem:[#allocation5 + $0x1a8] sm:$0xff]
    %v209 = vld [vmem:[#allocation5 + $0x1b0] sm:$0xff]
    %v210 = vld [vmem:[#allocation5 + $0x1b8] sm:$0xff]
    %v211 = vld [vmem:[#allocation5 + $0x1c0] sm:$0xff]
    %v212 = vld [vmem:[#allocation5 + $0x1c8] sm:$0xff]
    %v213 = vld [vmem:[#allocation5 + $0x1d0] sm:$0xff]
    %v214 = vld [vmem:[#allocation5 + $0x1d8] sm:$0xff]
    %v215 = vld [vmem:[#allocation5 + $0x1e0] sm:$0xff]
    %v216 = vld [vmem:[#allocation5 + $0x1e8] sm:$0xff]
    %v217 = vld [vmem:[#allocation5 + $0x1f0] sm:$0xff]
    %v218 = vld [vmem:[#allocation5 + $0x1f8] sm:$0xff]
    %v219 = vld [vmem:[%s5] sm:$0x3]
    %v221 = vlaneseq
    %v222 = vshrl.u32 %v221, 7
    %v223 = vsub.s32 0, %v222
    %v224 = vrot.slane %v219, %v223
    %v225 = vlaneseq
    %v226 = vshrl.u32 %v225, 7
    %v227 = vsub.s32 1, %v226
    %v228 = vrot.slane %v219, %v227
    %v233 = vunpack.c.l.s4 1983009808
    %v234 = vunpack.c.0.s8 %v233
    %v235 = vlaneseq
    %v236 = vshrl.u32 %v235, 7
    %v237 = vsub.s32 %v234, %v236
    %v238 = vrot.slane %v154, %v237
    %v239 = vcombine.high %v238, %v238
    %242 = vmatprep.subr.mxu0 %v156
    %243 = vmatpush1.msra.mxu0 %v155
    %244 = vmatprep.subr.mxu0 %v158
    %245 = vmatpush1.msra.mxu0 %v157
    %246 = vmatprep.subr.mxu0 %v160
    %247 = vmatpush1.msra.mxu0 %v159
    %248 = vmatprep.subr.mxu0 %v162
    %249 = vmatpush1.msra.mxu0 %v161
    %250 = vmatprep.subr.mxu0 %v164
    %251 = vmatpush1.msra.mxu0 %v163
    %252 = vmatprep.subr.mxu0 %v166
    %253 = vmatpush1.msra.mxu0 %v165
    %254 = vmatprep.subr.mxu0 %v168
    %255 = vmatpush1.msra.mxu0 %v167
    %256 = vmatprep.subr.mxu0 %v170
    %257 = vmatpush1.msra.mxu0 %v169
    %258 = vmatprep.subr.mxu0 %v172
    %259 = vmatpush1.msra.mxu0 %v171
    %260 = vmatprep.subr.mxu0 %v174
    %261 = vmatpush1.msra.mxu0 %v173
    %262 = vmatprep.subr.mxu0 %v176
    %263 = vmatpush1.msra.mxu0 %v175
    %264 = vmatprep.subr.mxu0 %v178
    %265 = vmatpush1.msra.mxu0 %v177
    %266 = vmatprep.subr.mxu0 %v180
    %267 = vmatpush1.msra.mxu0 %v179
    %268 = vmatprep.subr.mxu0 %v182
    %269 = vmatpush1.msra.mxu0 %v181
    %270 = vmatprep.subr.mxu0 %v184
    %271 = vmatpush1.msra.mxu0 %v183
    %272 = vmatprep.subr.mxu0 %v186
    %273 = vmatpush1.msra.mxu0 %v185
    %274 = vmatprep.subr.mxu0 %v188
    %275 = vmatpush1.msra.mxu0 %v187
    %276 = vmatprep.subr.mxu0 %v190
    %277 = vmatpush1.msra.mxu0 %v189
    %278 = vmatprep.subr.mxu0 %v192
    %279 = vmatpush1.msra.mxu0 %v191
    %280 = vmatprep.subr.mxu0 %v194
    %281 = vmatpush1.msra.mxu0 %v193
    %282 = vmatprep.subr.mxu0 %v196
    %283 = vmatpush1.msra.mxu0 %v195
    %284 = vmatprep.subr.mxu0 %v198
    %285 = vmatpush1.msra.mxu0 %v197
    %286 = vmatprep.subr.mxu0 %v200
    %287 = vmatpush1.msra.mxu0 %v199
    %288 = vmatprep.subr.mxu0 %v202
    %289 = vmatpush1.msra.mxu0 %v201
    %290 = vmatprep.subr.mxu0 %v204
    %291 = vmatpush1.msra.mxu0 %v203
    %292 = vmatprep.subr.mxu0 %v206
    %293 = vmatpush1.msra.mxu0 %v205
    %294 = vmatprep.subr.mxu0 %v208
    %295 = vmatpush1.msra.mxu0 %v207
    %296 = vmatprep.subr.mxu0 %v210
    %297 = vmatpush1.msra.mxu0 %v209
    %298 = vmatprep.subr.mxu0 %v212
    %299 = vmatpush1.msra.mxu0 %v211
    %300 = vmatprep.subr.mxu0 %v214
    %301 = vmatpush1.msra.mxu0 %v213
    %302 = vmatprep.subr.mxu0 %v216
    %303 = vmatpush1.msra.mxu0 %v215
    %304 = vmatprep.subr.mxu0 %v218
    %305 = vmatpush1.msra.mxu0 %v217
    %306 = vmatprep.mubr.f32.mxu0 %v239
    %307 = vmatmul.mubr.f32.gmra.mrb[0].mxu0 %v238
    %v308 = vpop.f32.mrb[0].mxu0
    %v309 = vadd.f32 %v224, %v308
    %v310 = vpop.f32.mrb[0].mxu0
    %v311 = vadd.f32 %v228, %v310
    %312 = vdwg.mxu0
    %v315 = vunpack.c.l.s4 1966171168
    %v316 = vunpack.c.0.s8 %v315
    %v317 = vlaneseq
    %v318 = vshrl.u32 %v317, 7
    %v319 = vsub.s32 %v316, %v318
    %v320 = vrot.slane %v309, %v319
    %v321 = vcombine.high %v320, %v320
    %v323 = vunpack.c.l.s4 1966171168
    %v324 = vunpack.c.0.s8 %v323
    %v325 = vlaneseq
    %v326 = vshrl.u32 %v325, 7
    %v327 = vsub.s32 %v324, %v326
    %v328 = vrot.slane %v320, %v327
    %v330 = vunpack.c.l.s4 1966171168
    %v331 = vunpack.c.0.s8 %v330
    %v332 = vlaneseq
    %v333 = vshrl.u32 %v332, 7
    %v334 = vsub.s32 %v331, %v333
    %v335 = vrot.slane %v321, %v334
    %v336 = vlaneseq
    %v337 = vshrl.u32 %v336, 7
    %v338 = vsub.s32 0, %v337
    %v339 = vrot.slane %v328, %v338
    %v340 = vlaneseq
    %v341 = vshrl.u32 %v340, 7
    %v342 = vsub.s32 0, %v341
    %v343 = vrot.slane %v335, %v342
    %v346 = vmul.f32 %v146, %v339
    %v347 = vmul.f32 %v151, %v343
    %v348 = vld [vmem:[%s6] sm:$0xff]
    %v349 = vld [vmem:[%s6 + $0x8] sm:$0xff]
    %v350 = vld [vmem:[%s6 + $0x10] sm:$0xff]
    %v351 = vld [vmem:[%s6 + $0x18] sm:$0xff]
    %v352 = vld [vmem:[%s6 + $0x20] sm:$0xff]
    %v353 = vld [vmem:[%s6 + $0x28] sm:$0xff]
    %v354 = vld [vmem:[%s6 + $0x30] sm:$0xff]
    %v355 = vld [vmem:[%s6 + $0x38] sm:$0xff]
    %v356 = vld [vmem:[%s6 + $0x40] sm:$0xff]
    %v357 = vld [vmem:[%s6 + $0x48] sm:$0xff]
    %v358 = vld [vmem:[%s6 + $0x50] sm:$0xff]
    %v359 = vld [vmem:[%s6 + $0x58] sm:$0xff]
    %v360 = vld [vmem:[%s6 + $0x60] sm:$0xff]
    %v361 = vld [vmem:[%s6 + $0x68] sm:$0xff]
    %v362 = vld [vmem:[%s6 + $0x70] sm:$0xff]
    %v363 = vld [vmem:[%s6 + $0x78] sm:$0xff]
    %364 = vmatprep.subr.mxu0 0.0
    %365 = vmatpush1.msra.mxu0 %v348
    %366 = vmatprep.subr.mxu0 0.0
    %367 = vmatpush1.msra.mxu0 %v349
    %368 = vmatprep.subr.mxu0 0.0
    %369 = vmatpush1.msra.mxu0 %v350
    %370 = vmatprep.subr.mxu0 0.0
    %371 = vmatpush1.msra.mxu0 %v351
    %372 = vmatprep.subr.mxu0 0.0
    %373 = vmatpush1.msra.mxu0 %v352
    %374 = vmatprep.subr.mxu0 0.0
    %375 = vmatpush1.msra.mxu0 %v353
    %376 = vmatprep.subr.mxu0 0.0
    %377 = vmatpush1.msra.mxu0 %v354
    %378 = vmatprep.subr.mxu0 0.0
    %379 = vmatpush1.msra.mxu0 %v355
    %380 = vmatprep.subr.mxu0 0.0
    %381 = vmatpush1.msra.mxu0 %v356
    %382 = vmatprep.subr.mxu0 0.0
    %383 = vmatpush1.msra.mxu0 %v357
    %384 = vmatprep.subr.mxu0 0.0
    %385 = vmatpush1.msra.mxu0 %v358
    %386 = vmatprep.subr.mxu0 0.0
    %387 = vmatpush1.msra.mxu0 %v359
    %388 = vmatprep.subr.mxu0 0.0
    %389 = vmatpush1.msra.mxu0 %v360
    %390 = vmatprep.subr.mxu0 0.0
    %391 = vmatpush1.msra.mxu0 %v361
    %392 = vmatprep.subr.mxu0 0.0
    %393 = vmatpush1.msra.mxu0 %v362
    %394 = vmatprep.subr.mxu0 0.0
    %395 = vmatpush1.msra.mxu0 %v363
    %396 = vmatprep.subr.mxu0 0.0
    %397 = vmatpush1.msra.mxu0 0.0
    %398 = vmatprep.subr.mxu0 0.0
    %399 = vmatpush1.msra.mxu0 0.0
    %400 = vmatprep.subr.mxu0 0.0
    %401 = vmatpush1.msra.mxu0 0.0
    %402 = vmatprep.subr.mxu0 0.0
    %403 = vmatpush1.msra.mxu0 0.0
    %404 = vmatprep.subr.mxu0 0.0
    %405 = vmatpush1.msra.mxu0 0.0
    %406 = vmatprep.subr.mxu0 0.0
    %407 = vmatpush1.msra.mxu0 0.0
    %408 = vmatprep.subr.mxu0 0.0
    %409 = vmatpush1.msra.mxu0 0.0
    %410 = vmatprep.subr.mxu0 0.0
    %411 = vmatpush1.msra.mxu0 0.0
    %412 = vmatprep.subr.mxu0 0.0
    %413 = vmatpush1.msra.mxu0 0.0
    %414 = vmatprep.subr.mxu0 0.0
    %415 = vmatpush1.msra.mxu0 0.0
    %416 = vmatprep.subr.mxu0 0.0
    %417 = vmatpush1.msra.mxu0 0.0
    %418 = vmatprep.subr.mxu0 0.0
    %419 = vmatpush1.msra.mxu0 0.0
    %420 = vmatprep.subr.mxu0 0.0
    %421 = vmatpush1.msra.mxu0 0.0
    %422 = vmatprep.subr.mxu0 0.0
    %423 = vmatpush1.msra.mxu0 0.0
    %424 = vmatprep.subr.mxu0 0.0
    %425 = vmatpush1.msra.mxu0 0.0
    %426 = vmatprep.subr.mxu0 0.0
    %427 = vmatpush1.msra.mxu0 0.0
    %428 = vmatprep.mubr.f32.mxu0 0.0
    %429 = vmatmul.mubr.f32.gmra.mrb[0].mxu0 %v346
    %v430 = vpop.f32.mrb[0].mxu0
    %v431 = vadd.f32 0.0, %v430
    %v432 = vpop.f32.mrb[0].mxu0
    %433 = vmatprep.mubr.f32.mxu0 0.0
    %434 = vmatmul.mubr.f32.gmra.mrb[0].mxu0 %v347
    %v435 = vpop.f32.mrb[0].mxu0
    %v436 = vadd.f32 0.0, %v435
    %v437 = vpop.f32.mrb[0].mxu0
    %438 = vdwg.mxu0
    %439 = vrot.lane.b32.xlu0 %v431, 32
    %v440 = vpop.permute.xlu0 %439
    %441 = vrot.lane.b32.xlu0 %v436, 32
    %v442 = vpop.permute.xlu0 %441
    %v443 = vmax.f32 %v431, %v440
    %v444 = vmax.f32 %v436, %v442
    %445 = vrot.lane.b32.xlu0 %v431, 64
    %v446 = vpop.permute.xlu0 %445
    %447 = vrot.lane.b32.xlu0 %v436, 64
    %v448 = vpop.permute.xlu0 %447
    %v449 = vmax.f32 %v443, %v446
    %v450 = vmax.f32 %v444, %v448
    %451 = vrot.lane.b32.xlu0 %v431, 96
    %v452 = vpop.permute.xlu0 %451
    %453 = vrot.lane.b32.xlu0 %v436, 96
    %v454 = vpop.permute.xlu0 %453
    %v455 = vmax.f32 %v449, %v452
    %v456 = vmax.f32 %v450, %v454
    %v457 = vsub.f32 %v431, %v455
    %v458 = vsub.f32 %v436, %v456
    %v459 = vmul.f32 %v457, 1.442695
    %v460 = vpow.pop %v459
    %v461 = vmul.f32 %v458, 1.442695
    %v462 = vpow.pop %v461
    %463 = vrot.lane.b32.xlu0 %v460, 32
    %v464 = vpop.permute.xlu0 %463
    %465 = vrot.lane.b32.xlu0 %v462, 32
    %v466 = vpop.permute.xlu0 %465
    %v467 = vadd.f32 %v460, %v464
    %v468 = vadd.f32 %v462, %v466
    %469 = vrot.lane.b32.xlu0 %v460, 64
    %v470 = vpop.permute.xlu0 %469
    %471 = vrot.lane.b32.xlu0 %v462, 64
    %v472 = vpop.permute.xlu0 %471
    %v473 = vadd.f32 %v467, %v470
    %v474 = vadd.f32 %v468, %v472
    %475 = vrot.lane.b32.xlu0 %v460, 96
    %v476 = vpop.permute.xlu0 %475
    %477 = vrot.lane.b32.xlu0 %v462, 96
    %v478 = vpop.permute.xlu0 %477
    %v479 = vadd.f32 %v473, %v476
    %v480 = vadd.f32 %v474, %v478
    %v481 = vrcp.pop %v479
    %v482 = vrcp.pop %v480
    %v483 = vmul.f32 %v460, %v481
    %v484 = vmul.f32 %v462, %v482
    %v487 = vunpack.c.l.s4 1966171168
    %v488 = vunpack.c.0.s8 %v487
    %v489 = vlaneseq
    %v490 = vshrl.u32 %v489, 7
    %v491 = vsub.s32 %v488, %v490
    %v492 = vrot.slane %v311, %v491
    %v493 = vcombine.high %v492, %v492
    %v495 = vunpack.c.l.s4 1966171168
    %v496 = vunpack.c.0.s8 %v495
    %v497 = vlaneseq
    %v498 = vshrl.u32 %v497, 7
    %v499 = vsub.s32 %v496, %v498
    %v500 = vrot.slane %v492, %v499
    %v502 = vunpack.c.l.s4 1966171168
    %v503 = vunpack.c.0.s8 %v502
    %v504 = vlaneseq
    %v505 = vshrl.u32 %v504, 7
    %v506 = vsub.s32 %v503, %v505
    %v507 = vrot.slane %v493, %v506
    %v508 = vlaneseq
    %v509 = vshrl.u32 %v508, 7
    %v510 = vsub.s32 0, %v509
    %v511 = vrot.slane %v500, %v510
    %v512 = vlaneseq
    %v513 = vshrl.u32 %v512, 7
    %v514 = vsub.s32 0, %v513
    %v515 = vrot.slane %v507, %v514
    %v518 = vmul.f32 %v483, %v511
    %v519 = vmul.f32 %v484, %v515
    %v520 = vld [vmem:[%s7] sm:$0xff]
    %v521 = vld [vmem:[%s7 + $0x8] sm:$0xff]
    %v522 = vld [vmem:[%s7 + $0x10] sm:$0xff]
    %v523 = vld [vmem:[%s7 + $0x18] sm:$0xff]
    %v524 = vld [vmem:[%s7 + $0x20] sm:$0xff]
    %v525 = vld [vmem:[%s7 + $0x28] sm:$0xff]
    %v526 = vld [vmem:[%s7 + $0x30] sm:$0xff]
    %v527 = vld [vmem:[%s7 + $0x38] sm:$0xff]
    %v528 = vld [vmem:[%s7 + $0x40] sm:$0xff]
    %v529 = vld [vmem:[%s7 + $0x48] sm:$0xff]
    %v530 = vld [vmem:[%s7 + $0x50] sm:$0xff]
    %v531 = vld [vmem:[%s7 + $0x58] sm:$0xff]
    %v532 = vld [vmem:[%s7 + $0x60] sm:$0xff]
    %v533 = vld [vmem:[%s7 + $0x68] sm:$0xff]
    %v534 = vld [vmem:[%s7 + $0x70] sm:$0xff]
    %v535 = vld [vmem:[%s7 + $0x78] sm:$0xff]
    %v536 = vld [vmem:[%s8] sm:$0x1]
    %v538 = vlaneseq
    %v539 = vshrl.u32 %v538, 7
    %v540 = vsub.s32 0, %v539
    %v541 = vrot.slane %v536, %v540
    %543 = vmatprep.subr.mxu0 0.0
    %544 = vmatpush1.msra.mxu0 %v520
    %545 = vmatprep.subr.mxu0 0.0
    %546 = vmatpush1.msra.mxu0 %v521
    %547 = vmatprep.subr.mxu0 0.0
    %548 = vmatpush1.msra.mxu0 %v522
    %549 = vmatprep.subr.mxu0 0.0
    %550 = vmatpush1.msra.mxu0 %v523
    %551 = vmatprep.subr.mxu0 0.0
    %552 = vmatpush1.msra.mxu0 %v524
    %553 = vmatprep.subr.mxu0 0.0
    %554 = vmatpush1.msra.mxu0 %v525
    %555 = vmatprep.subr.mxu0 0.0
    %556 = vmatpush1.msra.mxu0 %v526
    %557 = vmatprep.subr.mxu0 0.0
    %558 = vmatpush1.msra.mxu0 %v527
    %559 = vmatprep.subr.mxu0 0.0
    %560 = vmatpush1.msra.mxu0 %v528
    %561 = vmatprep.subr.mxu0 0.0
    %562 = vmatpush1.msra.mxu0 %v529
    %563 = vmatprep.subr.mxu0 0.0
    %564 = vmatpush1.msra.mxu0 %v530
    %565 = vmatprep.subr.mxu0 0.0
    %566 = vmatpush1.msra.mxu0 %v531
    %567 = vmatprep.subr.mxu0 0.0
    %568 = vmatpush1.msra.mxu0 %v532
    %569 = vmatprep.subr.mxu0 0.0
    %570 = vmatpush1.msra.mxu0 %v533
    %571 = vmatprep.subr.mxu0 0.0
    %572 = vmatpush1.msra.mxu0 %v534
    %573 = vmatprep.subr.mxu0 0.0
    %574 = vmatpush1.msra.mxu0 %v535
    %575 = vmatprep.subr.mxu0 0.0
    %576 = vmatpush1.msra.mxu0 0.0
    %577 = vmatprep.subr.mxu0 0.0
    %578 = vmatpush1.msra.mxu0 0.0
    %579 = vmatprep.subr.mxu0 0.0
    %580 = vmatpush1.msra.mxu0 0.0
    %581 = vmatprep.subr.mxu0 0.0
    %582 = vmatpush1.msra.mxu0 0.0
    %583 = vmatprep.subr.mxu0 0.0
    %584 = vmatpush1.msra.mxu0 0.0
    %585 = vmatprep.subr.mxu0 0.0
    %586 = vmatpush1.msra.mxu0 0.0
    %587 = vmatprep.subr.mxu0 0.0
    %588 = vmatpush1.msra.mxu0 0.0
    %589 = vmatprep.subr.mxu0 0.0
    %590 = vmatpush1.msra.mxu0 0.0
    %591 = vmatprep.subr.mxu0 0.0
    %592 = vmatpush1.msra.mxu0 0.0
    %593 = vmatprep.subr.mxu0 0.0
    %594 = vmatpush1.msra.mxu0 0.0
    %595 = vmatprep.subr.mxu0 0.0
    %596 = vmatpush1.msra.mxu0 0.0
    %597 = vmatprep.subr.mxu0 0.0
    %598 = vmatpush1.msra.mxu0 0.0
    %599 = vmatprep.subr.mxu0 0.0
    %600 = vmatpush1.msra.mxu0 0.0
    %601 = vmatprep.subr.mxu0 0.0
    %602 = vmatpush1.msra.mxu0 0.0
    %603 = vmatprep.subr.mxu0 0.0
    %604 = vmatpush1.msra.mxu0 0.0
    %605 = vmatprep.subr.mxu0 0.0
    %606 = vmatpush1.msra.mxu0 0.0
    %607 = vmatprep.mubr.f32.mxu0 0.0
    %608 = vmatmul.mubr.f32.gmra.mrb[0].mxu0 %v518
    %v609 = vpop.f32.mrb[0].mxu0
    %v610 = vadd.f32 %v541, %v609
    %v611 = vpop.f32.mrb[0].mxu0
    %612 = vmatprep.mubr.f32.mxu0 0.0
    %613 = vmatmul.mubr.f32.gmra.mrb[0].mxu0 %v519
    %v614 = vpop.f32.mrb[0].mxu0
    %v615 = vadd.f32 %v541, %v614
    %v616 = vpop.f32.mrb[0].mxu0
    %617 = vdwg.mxu0
    %v618 = vadd.f32 %v610, %v59
    %v619 = vadd.f32 %v615, %v60
    %620 = vst.msk [vmem:[#allocation7] sm:$0xff] %vm72, %v618
    %621 = vst.msk [vmem:[#allocation7 + $0x8] sm:$0xff] %vm72, %v619
    // Predicated region
    $region46: #{tpu_custom_call.1} parent=1 // pred_check
      _
    $region47: #{tpu_custom_call.1} parent=1 // pred_check_branch
      %623 = sbr.rel (0) target = $region49
    $region48: #{tpu_custom_call.1} parent=1 // pred_region
      %s625 = ssub.s32 256, 256
      %626 = vsyncadd [#allocation4], %s625
      %s627 = sshll.u32 [#allocation7], 4
      %s628 = int_to_ptr.vmem [resolvable:$true] %s627
      %633 = dma.vmem_to_hbm [thread:$0]  %s628, 256, %s9, [#allocation4], 128, 128, 8
    $region49: #{tpu_custom_call.1} parent=1 // pred_fallthru
      _
    // Predicated region
    $region50: #{tpu_custom_call.1} parent=1 // pred_check
      _
    $region51: #{tpu_custom_call.1} parent=1 // pred_check_branch
      %635 = sbr.rel (0) target = $region53
    $region52: #{tpu_custom_call.1} parent=1 // pred_region
      %636 = dma.done [#allocation4], 256
    $region53: #{tpu_custom_call.1} parent=1 // pred_fallthru
      _
    %637 = vsyncpa [#allocation3], 1
    %638 = vsyncpa [#allocation6], 1
    %639 = vsyncpa [#allocation4], 1

</llo_original>
